<compile_context>
chip_gen: v5e
topology: v5e:2x2
jax: 0.10.0
libtpu: 0.0.40
codegen_flags: <defaults>
</compile_context>

<pallas_src>
import functools

import jax
import jax.numpy as jnp
from jax.experimental import pallas as pl
from jax.experimental.pallas import tpu as pltpu

BN_EPS = 1e-5


def _round_up(x, m):
    return (x + m - 1) // m * m


def _pick_row_tile(H, W, target_lanes=2048):
    """Largest-depth row tiling: TR | H, TR*W % 128 == 0 (or TR == H)."""
    cands = [t for t in range(1, H + 1)
             if H % t == 0 and ((t * W) % 128 == 0 or t == H)]
    if not cands:
        return H
    for t in cands:                      # smallest tile reaching target lanes
        if t * W >= target_lanes:
            return t
    return cands[0]                      # whole image is small: deepest grid


def _space_attention_kernel(x_ref, halo_ref, mask_ref, w_ref, o_ref, packed_ref,
                            *, C, TR, W, Lpp):
    # x_ref:     (1, C, TR*W)      lane-dense center rows of one tile
    # halo_ref:  (1, 1, C, 2*W)    [row above | row below] of this tile
    # mask_ref:  (2, Lpp)          hoisted source-column border masks
    # w_ref:     (C+1, 9*C+1)      fused per-tap weights + bias column
    # o_ref:     (1, C, TR*W)
    # packed_ref:(9*C+1, TR*W)     VMEM scratch: packed-tap matmul operand
    TRW = TR * W
    x_c = x_ref[0]                               # (C, TRW)
    halo = halo_ref[0, 0]                        # (C, 2W)

    # Zero-sentineled slab: [0 | top halo row | center rows | bottom halo | 0s].
    tail = Lpp - (1 + W + TRW + W)
    parts = [jnp.zeros((C, 1), x_c.dtype), halo[:, :W], x_c, halo[:, W:]]
    if tail > 0:
        parts.append(jnp.zeros((C, tail), x_c.dtype))
    slab = jnp.concatenate(parts, axis=1)        # (C, Lpp)

    # Source masking (pre-matmul): dw=-1 taps never legitimately read image
    # column W-1; dw=+1 taps never read column 0.  Two multiplies total.
    slab_dw = (slab * mask_ref[0:1, :],          # sources for dw = -1
               slab,                             # sources for dw =  0
               slab * mask_ref[1:2, :])          # sources for dw = +1

    # Pack the 9 taps (static slices of the slab) into one K = 9*C + 1 operand.
    for dh in (-1, 0, 1):
        for dw in (-1, 0, 1):
            t = (dh + 1) * 3 + (dw + 1)
            start = (1 + dh) * W + dw + 1        # in [0, 2*W + 2]
            packed_ref[t * C:(t + 1) * C, :] = slab_dw[dw + 1][:, start:start + TRW]
    packed_ref[9 * C:9 * C + 1, :] = jnp.ones((1, TRW), packed_ref.dtype)

    # One MXU matmul: rows 0..C-1 = conv2, row C = BN-folded conv1 logit,
    # biases folded via the ones row / bias column.
    acc = jnp.dot(w_ref[...], packed_ref[...],
                  preferred_element_type=jnp.float32)     # (C+1, TRW) f32

    att = jax.nn.sigmoid(acc[C:C + 1, :])                 # (1, TRW)
    out = acc[:C, :] * att + x_c.astype(jnp.float32)      # residual add (f32)
    o_ref[0] = out.astype(o_ref.dtype)


@functools.partial(jax.jit, static_argnames=("io_dtype",))
def space_attention(x, w2, b2, w1, b1, bn_params, *, io_dtype=None):
    """x: (N, C, H, W); w2: (C, C, 3, 3); b2: (C,); w1: (1, C, 3, 3); b1: (1,)
    bn_params: (4,) = [gamma, beta, running_mean, running_var] (eval mode).
    io_dtype: HBM activation dtype (bf16 for production; f32 for validation)."""
    N, C, H, W = x.shape
    if io_dtype is None:
        io_dtype = x.dtype
    TR = _pick_row_tile(H, W)
    R = H // TR
    TRW = TR * W
    Lpp = _round_up(TRW + 2 * W + 2, 128)        # slab length (lane padded)

    f32 = jnp.float32
    xf = x.astype(f32)

    # --- fold BatchNorm2d(1) (eval) into conv1, fuse conv1+conv2+bias slab ---
    bn = bn_params.astype(f32)
    gamma, beta, mean, var = bn[0], bn[1], bn[2], bn[3]
    scale = gamma * jax.lax.rsqrt(var + BN_EPS)
    w1f = w1.astype(f32) * scale                               # (1, C, 3, 3)
    b1f = (b1.astype(f32) - mean) * scale + beta               # (1,)
    w_all = jnp.concatenate([w2.astype(f32), w1f], axis=0)     # (C+1, C, 3, 3)
    w_taps = jnp.transpose(w_all, (2, 3, 0, 1)).reshape(9, C + 1, C)
    w_k = jnp.transpose(w_taps, (1, 0, 2)).reshape(C + 1, 9 * C)  # [co, t*C+ci]
    b_all = jnp.concatenate([b2.astype(f32), b1f], axis=0)     # (C+1,)
    w_packed = jnp.concatenate([w_k, b_all[:, None]], axis=1)  # (C+1, 9C+1)

    # --- activations: lane-dense (N, C, H*W) in io_dtype ---------------------
    x_flat = xf.reshape(N, C, H * W).astype(io_dtype)

    # --- per-tile halo rows: row above / below each row tile (zeros at edges)
    xp = jnp.pad(xf, ((0, 0), (0, 0), (1, 1), (0, 0)))          # (N, C, H+2, W)
    top = xp[:, :, 0:H:TR, :]                                   # (N, C, R, W)
    bot = xp[:, :, TR + 1:H + 2:TR, :]                          # (N, C, R, W)
    halos = jnp.stack([top, bot], axis=3)                       # (N, C, R, 2, W)
    halos = jnp.transpose(halos, (0, 2, 1, 3, 4)).reshape(N, R, C, 2 * W)
    halos = halos.astype(io_dtype)

    # --- hoisted border masks (source-column masks, slab coordinates) --------
    q = jnp.arange(Lpp)
    col = jnp.mod(q - 1, W)
    interior = (q >= 1) & (q < 1 + (TR + 2) * W)
    m_for_dw_m1 = jnp.where(interior & (col == W - 1), 0.0, 1.0)
    m_for_dw_p1 = jnp.where(interior & (col == 0), 0.0, 1.0)
    masks = jnp.stack([m_for_dw_m1, m_for_dw_p1]).astype(io_dtype)  # (2, Lpp)

    w_in = w_packed.astype(io_dtype)

    kernel = functools.partial(_space_attention_kernel, C=C, TR=TR, W=W, Lpp=Lpp)
    out_flat = pl.pallas_call(
        kernel,
        out_shape=jax.ShapeDtypeStruct((N, C, H * W), io_dtype),
        grid_spec=pltpu.PrefetchScalarGridSpec(
            num_scalar_prefetch=0,
            grid=(N, R),
            in_specs=[
                pl.BlockSpec((1, C, TRW), lambda n, r: (n, 0, r)),
                pl.BlockSpec((1, 1, C, 2 * W), lambda n, r: (n, r, 0, 0)),
                pl.BlockSpec((2, Lpp), lambda n, r: (0, 0)),
                pl.BlockSpec((C + 1, 9 * C + 1), lambda n, r: (0, 0)),
            ],
            out_specs=pl.BlockSpec((1, C, TRW), lambda n, r: (n, 0, r)),
            scratch_shapes=[pltpu.VMEM((9 * C + 1, TRW), io_dtype)],
        ),
        compiler_params=pltpu.CompilerParams(
            dimension_semantics=("parallel", "parallel"),
            vmem_limit_bytes=32 * 1024 * 1024),
    )(x_flat, halos, masks, w_in)
    return out_flat.reshape(N, C, H, W)


def _reference_forward(x, w2, b2, w1, b1, bn_params):
    """Pure-JAX reference (lax.conv) mirroring the PyTorch module in eval mode."""
    dn = ("NCHW", "OIHW", "NCHW")
    conv2 = jax.lax.conv_general_dilated(
        x, w2, (1, 1), ((1, 1), (1, 1)), dimension_numbers=dn)
    conv2 = conv2 + b2[None, :, None, None]
    conv1 = jax.lax.conv_general_dilated(
        x, w1, (1, 1), ((1, 1), (1, 1)), dimension_numbers=dn)
    conv1 = conv1 + b1[None, :, None, None]
    gamma, beta, mean, var = bn_params
    att = jax.nn.sigmoid((conv1 - mean) * jax.lax.rsqrt(var + BN_EPS) * gamma
                         + beta)
    return conv2 * att + x


if __name__ == "__main__":
    N, C, H, W = 2, 4, 16, 16

    key = jax.random.PRNGKey(0)
    kx, kw2, kb2, kw1, kb1 = jax.random.split(key, 5)

    x = jax.random.normal(kx, (N, C, H, W), dtype=jnp.float32)

    # deterministic parameter init (PyTorch-like uniform ±1/sqrt(fan_in*k*k))
    bound = 1.0 / (C * 3 * 3) ** 0.5
    w2 = jax.random.uniform(kw2, (C, C, 3, 3), minval=-bound, maxval=bound,
                            dtype=jnp.float32)
    b2 = jax.random.uniform(kb2, (C,), minval=-bound, maxval=bound,
                            dtype=jnp.float32)
    w1 = jax.random.uniform(kw1, (1, C, 3, 3), minval=-bound, maxval=bound,
                            dtype=jnp.float32)
    b1 = jax.random.uniform(kb1, (1,), minval=-bound, maxval=bound,
                            dtype=jnp.float32)
    # BatchNorm2d(1): [gamma, beta, running_mean, running_var]
    bn_params = jnp.array([1.2, -0.1, 0.05, 0.8], dtype=jnp.float32)

    ref = _reference_forward(x, w2, b2, w1, b1, bn_params)

    # f32 I/O path: tight numerical check against the lax.conv reference.
    out_f32 = jax.block_until_ready(
        space_attention(x, w2, b2, w1, b1, bn_params, io_dtype=jnp.float32))
    assert out_f32.shape == (N, C, H, W)
    assert jnp.allclose(out_f32, ref, atol=1e-5, rtol=1e-5), (
        float(jnp.max(jnp.abs(out_f32 - ref))))

    # bf16 HBM-I/O path (production, mem-bound config): loose tolerance.
    out_bf16 = jax.block_until_ready(
        space_attention(x, w2, b2, w1, b1, bn_params, io_dtype=jnp.bfloat16))
    assert out_bf16.shape == (N, C, H, W)
    assert jnp.allclose(out_bf16.astype(jnp.float32), ref,
                        atol=1e-1, rtol=5e-2), (
        float(jnp.max(jnp.abs(out_bf16.astype(jnp.float32) - ref))))

    print("KERNEL_OK")
</pallas_src>

<mosaic_0001>
module attributes {stable_mosaic.version = 11 : i64} {
  func.func @_space_attention_kernel(%arg0: i32, %arg1: i32, %arg2: memref<1x4x128xf32, #tpu.memory_space<vmem>>, %arg3: memref<1x1x4x32xf32, #tpu.memory_space<vmem>>, %arg4: memref<2x256xf32, #tpu.memory_space<vmem>>, %arg5: memref<5x37xf32, #tpu.memory_space<vmem>>, %arg6: memref<1x4x128xf32, #tpu.memory_space<vmem>>, %arg7: memref<37x128xf32, #tpu.memory_space<vmem>>) attributes {dimension_semantics = [#tpu.dimension_semantics<parallel>, #tpu.dimension_semantics<parallel>], iteration_bounds = array<i64: 2, 2>, scalar_prefetch = 0 : i64, scratch_operands = 1 : i64, tpu.core_type = #tpu.core_type<tc>, window_params = [{transform_indices = @transform_0, window_bounds = array<i64: 1, 4, 128>}, {transform_indices = @transform_1, window_bounds = array<i64: 1, 1, 4, 32>}, {pipeline_mode = #tpu.pipeline_mode<synchronous>, transform_indices = @transform_2, window_bounds = array<i64: 2, 256>}, {pipeline_mode = #tpu.pipeline_mode<synchronous>, transform_indices = @transform_3, window_bounds = array<i64: 5, 37>}, {transform_indices = @transform_4, window_bounds = array<i64: 1, 4, 128>}]} {
    %c0 = arith.constant 0 : index
    %c0_0 = arith.constant 0 : index
    %c0_1 = arith.constant 0 : index
    %0 = vector.load %arg2[%c0, %c0_0, %c0_1] : memref<1x4x128xf32, #tpu.memory_space<vmem>>, vector<1x4x128xf32>
    %1 = vector.shape_cast %0 : vector<1x4x128xf32> to vector<4x128xf32>
    %c0_2 = arith.constant 0 : index
    %c0_3 = arith.constant 0 : index
    %c0_4 = arith.constant 0 : index
    %c0_5 = arith.constant 0 : index
    %2 = vector.load %arg3[%c0_2, %c0_3, %c0_4, %c0_5] : memref<1x1x4x32xf32, #tpu.memory_space<vmem>>, vector<1x1x4x32xf32>
    %3 = vector.shape_cast %2 : vector<1x1x4x32xf32> to vector<4x32xf32>
    %cst = arith.constant 0.000000e+00 : f32
    %4 = vector.broadcast %cst : f32 to vector<4x1xf32>
    %5 = vector.extract_strided_slice %3 {offsets = [0, 0], sizes = [4, 16], strides = [1, 1]} : vector<4x32xf32> to vector<4x16xf32>
    %6 = vector.extract_strided_slice %3 {offsets = [0, 16], sizes = [4, 16], strides = [1, 1]} : vector<4x32xf32> to vector<4x16xf32>
    %cst_6 = arith.constant 0.000000e+00 : f32
    %7 = vector.broadcast %cst_6 : f32 to vector<4x95xf32>
    %8 = tpu.concatenate %4, %5, %1, %6, %7 in 1 : vector<4x1xf32>, vector<4x16xf32>, vector<4x128xf32>, vector<4x16xf32>, vector<4x95xf32> -> vector<4x256xf32>
    %c0_7 = arith.constant 0 : index
    %c0_8 = arith.constant 0 : index
    %9 = vector.load %arg4[%c0_7, %c0_8] : memref<2x256xf32, #tpu.memory_space<vmem>>, vector<1x256xf32>
    %10 = vector.broadcast %9 : vector<1x256xf32> to vector<4x256xf32>
    %11 = arith.mulf %8, %10 : vector<4x256xf32>
    %c1 = arith.constant 1 : index
    %c0_9 = arith.constant 0 : index
    %12 = vector.load %arg4[%c1, %c0_9] : memref<2x256xf32, #tpu.memory_space<vmem>>, vector<1x256xf32>
    %13 = vector.broadcast %12 : vector<1x256xf32> to vector<4x256xf32>
    %14 = arith.mulf %8, %13 : vector<4x256xf32>
    %15 = vector.extract_strided_slice %11 {offsets = [0, 0], sizes = [4, 128], strides = [1, 1]} : vector<4x256xf32> to vector<4x128xf32>
    %c0_10 = arith.constant 0 : index
    %c0_11 = arith.constant 0 : index
    %16 = vector.load %arg7[%c0_10, %c0_11] : memref<37x128xf32, #tpu.memory_space<vmem>>, vector<4x128xf32>
    tpu.vector_store %arg7[%c0_10, %c0_11], %15 {strides = array<i32>} : memref<37x128xf32, #tpu.memory_space<vmem>>, vector<4x128xf32>,
    %17 = vector.extract_strided_slice %8 {offsets = [0, 1], sizes = [4, 128], strides = [1, 1]} : vector<4x256xf32> to vector<4x128xf32>
    %c4 = arith.constant 4 : index
    %c0_12 = arith.constant 0 : index
    %18 = vector.load %arg7[%c4, %c0_12] : memref<37x128xf32, #tpu.memory_space<vmem>>, vector<4x128xf32>
    tpu.vector_store %arg7[%c4, %c0_12], %17 {strides = array<i32>} : memref<37x128xf32, #tpu.memory_space<vmem>>, vector<4x128xf32>,
    %19 = vector.extract_strided_slice %14 {offsets = [0, 2], sizes = [4, 128], strides = [1, 1]} : vector<4x256xf32> to vector<4x128xf32>
    %c8 = arith.constant 8 : index
    %c0_13 = arith.constant 0 : index
    %20 = vector.load %arg7[%c8, %c0_13] : memref<37x128xf32, #tpu.memory_space<vmem>>, vector<4x128xf32>
    tpu.vector_store %arg7[%c8, %c0_13], %19 {strides = array<i32>} : memref<37x128xf32, #tpu.memory_space<vmem>>, vector<4x128xf32>,
    %21 = vector.extract_strided_slice %11 {offsets = [0, 16], sizes = [4, 128], strides = [1, 1]} : vector<4x256xf32> to vector<4x128xf32>
    %c12 = arith.constant 12 : index
    %c0_14 = arith.constant 0 : index
    %22 = vector.load %arg7[%c12, %c0_14] : memref<37x128xf32, #tpu.memory_space<vmem>>, vector<4x128xf32>
    tpu.vector_store %arg7[%c12, %c0_14], %21 {strides = array<i32>} : memref<37x128xf32, #tpu.memory_space<vmem>>, vector<4x128xf32>,
    %23 = vector.extract_strided_slice %8 {offsets = [0, 17], sizes = [4, 128], strides = [1, 1]} : vector<4x256xf32> to vector<4x128xf32>
    %c16 = arith.constant 16 : index
    %c0_15 = arith.constant 0 : index
    %24 = vector.load %arg7[%c16, %c0_15] : memref<37x128xf32, #tpu.memory_space<vmem>>, vector<4x128xf32>
    tpu.vector_store %arg7[%c16, %c0_15], %23 {strides = array<i32>} : memref<37x128xf32, #tpu.memory_space<vmem>>, vector<4x128xf32>,
    %25 = vector.extract_strided_slice %14 {offsets = [0, 18], sizes = [4, 128], strides = [1, 1]} : vector<4x256xf32> to vector<4x128xf32>
    %c20 = arith.constant 20 : index
    %c0_16 = arith.constant 0 : index
    %26 = vector.load %arg7[%c20, %c0_16] : memref<37x128xf32, #tpu.memory_space<vmem>>, vector<4x128xf32>
    tpu.vector_store %arg7[%c20, %c0_16], %25 {strides = array<i32>} : memref<37x128xf32, #tpu.memory_space<vmem>>, vector<4x128xf32>,
    %27 = vector.extract_strided_slice %11 {offsets = [0, 32], sizes = [4, 128], strides = [1, 1]} : vector<4x256xf32> to vector<4x128xf32>
    %c24 = arith.constant 24 : index
    %c0_17 = arith.constant 0 : index
    %28 = vector.load %arg7[%c24, %c0_17] : memref<37x128xf32, #tpu.memory_space<vmem>>, vector<4x128xf32>
    tpu.vector_store %arg7[%c24, %c0_17], %27 {strides = array<i32>} : memref<37x128xf32, #tpu.memory_space<vmem>>, vector<4x128xf32>,
    %29 = vector.extract_strided_slice %8 {offsets = [0, 33], sizes = [4, 128], strides = [1, 1]} : vector<4x256xf32> to vector<4x128xf32>
    %c28 = arith.constant 28 : index
    %c0_18 = arith.constant 0 : index
    %30 = vector.load %arg7[%c28, %c0_18] : memref<37x128xf32, #tpu.memory_space<vmem>>, vector<4x128xf32>
    tpu.vector_store %arg7[%c28, %c0_18], %29 {strides = array<i32>} : memref<37x128xf32, #tpu.memory_space<vmem>>, vector<4x128xf32>,
    %31 = vector.extract_strided_slice %14 {offsets = [0, 34], sizes = [4, 128], strides = [1, 1]} : vector<4x256xf32> to vector<4x128xf32>
    %c32 = arith.constant 32 : index
    %c0_19 = arith.constant 0 : index
    %32 = vector.load %arg7[%c32, %c0_19] : memref<37x128xf32, #tpu.memory_space<vmem>>, vector<4x128xf32>
    tpu.vector_store %arg7[%c32, %c0_19], %31 {strides = array<i32>} : memref<37x128xf32, #tpu.memory_space<vmem>>, vector<4x128xf32>,
    %cst_20 = arith.constant 1.000000e+00 : f32
    %33 = vector.broadcast %cst_20 : f32 to vector<1x128xf32>
    %c36 = arith.constant 36 : index
    %c0_21 = arith.constant 0 : index
    %34 = vector.load %arg7[%c36, %c0_21] : memref<37x128xf32, #tpu.memory_space<vmem>>, vector<1x128xf32>
    tpu.vector_store %arg7[%c36, %c0_21], %33 {strides = array<i32>} : memref<37x128xf32, #tpu.memory_space<vmem>>, vector<1x128xf32>,
    %c0_22 = arith.constant 0 : index
    %c0_23 = arith.constant 0 : index
    %35 = vector.load %arg5[%c0_22, %c0_23] : memref<5x37xf32, #tpu.memory_space<vmem>>, vector<5x37xf32>
    %c0_24 = arith.constant 0 : index
    %c0_25 = arith.constant 0 : index
    %36 = vector.load %arg7[%c0_24, %c0_25] : memref<37x128xf32, #tpu.memory_space<vmem>>, vector<37x128xf32>
    %cst_26 = arith.constant dense<0.000000e+00> : vector<5x128xf32>
    %37 = tpu.matmul %35, %36, %cst_26 {dimension_numbers = #tpu.dot_dimension_numbers<[1], [0], [0], [1], [0, 0, 1, 1], [], []>} : vector<5x37xf32>, vector<37x128xf32>, vector<5x128xf32> -> vector<5x128xf32>
    %38 = vector.extract_strided_slice %37 {offsets = [4, 0], sizes = [1, 128], strides = [1, 1]} : vector<5x128xf32> to vector<1x128xf32>
    %39 = arith.negf %38 : vector<1x128xf32>
    %40 = math.exp %39 : vector<1x128xf32>
    %cst_27 = arith.constant 1.000000e+00 : f32
    %41 = vector.broadcast %cst_27 : f32 to vector<1x128xf32>
    %42 = arith.addf %41, %40 : vector<1x128xf32>
    %43 = arith.divf %41, %42 : vector<1x128xf32>
    %44 = vector.extract_strided_slice %37 {offsets = [0, 0], sizes = [4, 128], strides = [1, 1]} : vector<5x128xf32> to vector<4x128xf32>
    %45 = vector.broadcast %43 : vector<1x128xf32> to vector<4x128xf32>
    %46 = arith.mulf %44, %45 : vector<4x128xf32>
    %47 = arith.addf %46, %1 : vector<4x128xf32>
    %c0_28 = arith.constant 0 : index
    %c0_29 = arith.constant 0 : index
    %c0_30 = arith.constant 0 : index
    %48 = vector.load %arg6[%c0_28, %c0_29, %c0_30] : memref<1x4x128xf32, #tpu.memory_space<vmem>>, vector<1x4x128xf32>
    %49 = vector.shape_cast %48 : vector<1x4x128xf32> to vector<4x128xf32>
    %50 = vector.shape_cast %47 : vector<4x128xf32> to vector<1x4x128xf32>
    tpu.vector_store %arg6[%c0_28, %c0_29, %c0_30], %50 {strides = array<i32>} : memref<1x4x128xf32, #tpu.memory_space<vmem>>, vector<1x4x128xf32>,
    return
  }
  func.func @transform_0(%arg0: i32, %arg1: i32) -> (i32, i32, i32) {
    %c0_i32 = arith.constant 0 : i32
    %c0_i32_0 = arith.constant 0 : i32
    return %arg0, %c0_i32, %arg1 : i32, i32, i32
  }
  func.func @transform_1(%arg0: i32, %arg1: i32) -> (i32, i32, i32, i32) {
    %c0_i32 = arith.constant 0 : i32
    %c0_i32_0 = arith.constant 0 : i32
    %c0_i32_1 = arith.constant 0 : i32
    return %arg0, %arg1, %c0_i32, %c0_i32_0 : i32, i32, i32, i32
  }
  func.func @transform_2(%arg0: i32, %arg1: i32) -> (i32, i32) {
    %c0_i32 = arith.constant 0 : i32
    %c0_i32_0 = arith.constant 0 : i32
    %c0_i32_1 = arith.constant 0 : i32
    return %c0_i32, %c0_i32_0 : i32, i32
  }
  func.func @transform_3(%arg0: i32, %arg1: i32) -> (i32, i32) {
    %c0_i32 = arith.constant 0 : i32
    %c0_i32_0 = arith.constant 0 : i32
    %c0_i32_1 = arith.constant 0 : i32
    return %c0_i32, %c0_i32_0 : i32, i32
  }
  func.func @transform_4(%arg0: i32, %arg1: i32) -> (i32, i32, i32) {
    %c0_i32 = arith.constant 0 : i32
    %c0_i32_0 = arith.constant 0 : i32
    return %arg0, %c0_i32, %arg1 : i32, i32, i32
  }
}

</mosaic_0001>

<llo_original>
// kernel: space_attention.1
$region0: #{space_attention.1}
  #allocation0 [shape = 'u32[]', space=smem, size = 0x4, offset = 0x4, fixed_abs, tag = 'smem constant byte address 0x4 - core index']
  #allocation1 [shape = 'u32[72,128]{1,0:T(1,128)}', space=vmem, size = 0x9000, scoped, tag = 'internal scratch']
  #allocation2 [shape = 'f32[37,128]{1,0:T(8,128)}', space=vmem, size = 0x5000, scoped, tag = 'scratch operand']
  %s0 = inlined_call_operand.vmem [shape: f32[2,4,256], index: 0, kind: input, shape index: {}]
  %s1 = inlined_call_operand.vmem [shape: f32[2,2,4,32], index: 1, kind: input, shape index: {}]
  %s2 = inlined_call_operand.vmem [shape: f32[2,256], index: 2, kind: input, shape index: {}]
  %s3 = inlined_call_operand.vmem [shape: f32[5,37], index: 3, kind: input, shape index: {}]
  %s4 = inlined_call_operand.vmem [shape: f32[2,4,256], index: 4, kind: output, shape index: {}]
  %s5 = sld [smem:[#allocation0]]
  $region49: #{space_attention.1} parent=0
    _
  %s7 = ssub.s32 1, %s5
  %s8 = scalar_select 0, %s7, %s5
  loop: start=0, step=1, limit=6
  $region2: #{space_attention.1} parent=0 // loop_pre_header
    _
  $region3: #{space_attention.1} parent=0 // loop_header
    %s10 = sphi 0, %s14
    %p11 = scmp.ge.s32.totalorder %s10, 6
    %s17 = sphi 0, %s29
    %s18 = sphi 0, %s25
    %s19 = sphi 0, %s17
    %s20 = sphi 0, %s18
    %s21 = sphi 0, %s19
    %s22 = sphi 0, %s20
    %s34 = sphi 0, %s36
    %s37 = sphi 0, %s34
    %s38 = sphi 0, %s37
    %s54 = sphi 0, %s38
    %s62 = sphi 0, %s64
    %s65 = sphi 0, %s62
    %s66 = sphi 0, %s65
    %s82 = sphi 0, %s66
    %s86 = sphi 0, %s86
    %s88 = sphi 0, %s86
    %s89 = sphi 0, %s88
    %s103 = sphi 0, %s89
    %s107 = sphi 0, %s107
    %s109 = sphi 0, %s107
    %s110 = sphi 0, %s109
    %s124 = sphi 0, %s110
    %s132 = sphi 0, %s134
    %s135 = sphi 0, %s132
    %s136 = sphi 0, %s135
    %s152 = sphi 0, %s136
  $region4: #{space_attention.1} parent=0 // loop_header_branch
    %13 = sbr.rel (%p11) target = $region8
  $region5: #{space_attention.1} parent=0 // loop_body
    %s15 = ssub.s32 %s10, 1
    %s16 = ssub.s32 %s10, 2
    %s23 = sadd.s32 1, %s18
    %p24 = scmp.ge.s32.totalorder %s23, 2
    %s25 = scalar_select %p24, 0, %s23
    %s26 = sadd.s32 1, %s17
    %s27 = scalar_select %p24, %s26, %s17
    %p28 = scmp.ge.s32.totalorder %s27, 2
    %s29 = scalar_select %p28, 0, %s27
    %s30 = ssub.s32 %s17, %s29
    %s31 = ssub.s32 %s18, %s25
    %s32 = sor.u32 %s30, %s31
    %p33 = scmp.eq.s32.totalorder %s32, 0
    %s35 = sadd.s32 %s34, 1
    %s36 = scalar_select %p33, %s34, %s35
    %p39 = pneg %p33
    %p40 = scmp.eq.s32.totalorder %s10, 3
    %p41 = por %p39, %p40
    %p42 = scmp.ne.s32.totalorder %s34, %s37
    %p43 = scmp.eq.s32.totalorder %s10, 0
    %p44 = por %p42, %p43
    %p45 = scmp.ne.s32.totalorder %s34, %s37
    %p46 = scmp.eq.s32.totalorder %s15, 3
    %p47 = por %p45, %p46
    %p48 = scmp.ne.s32.totalorder %s37, %s38
    %p49 = scmp.eq.s32.totalorder %s15, 0
    %p50 = por %p48, %p49
    %p51 = scmp.ne.s32.totalorder %s37, %s38
    %p52 = scmp.eq.s32.totalorder %s16, 3
    %p53 = por %p51, %p52
    %p55 = scmp.ne.s32.totalorder %s38, %s54
    %p56 = scmp.eq.s32.totalorder %s16, 0
    %p57 = por %p55, %p56
    %s58 = ssub.s32 %s17, %s29
    %s59 = ssub.s32 %s18, %s25
    %s60 = sor.u32 %s58, %s59
    %p61 = scmp.eq.s32.totalorder %s60, 0
    %s63 = sadd.s32 %s62, 1
    %s64 = scalar_select %p61, %s62, %s63
    %p67 = pneg %p61
    %p68 = scmp.eq.s32.totalorder %s10, 3
    %p69 = por %p67, %p68
    %p70 = scmp.ne.s32.totalorder %s62, %s65
    %p71 = scmp.eq.s32.totalorder %s10, 0
    %p72 = por %p70, %p71
    %p73 = scmp.ne.s32.totalorder %s62, %s65
    %p74 = scmp.eq.s32.totalorder %s15, 3
    %p75 = por %p73, %p74
    %p76 = scmp.ne.s32.totalorder %s65, %s66
    %p77 = scmp.eq.s32.totalorder %s15, 0
    %p78 = por %p76, %p77
    %p79 = scmp.ne.s32.totalorder %s65, %s66
    %p80 = scmp.eq.s32.totalorder %s16, 3
    %p81 = por %p79, %p80
    %p83 = scmp.ne.s32.totalorder %s66, %s82
    %p84 = scmp.eq.s32.totalorder %s16, 0
    %p85 = por %p83, %p84
    %s87 = sadd.s32 %s86, 1
    %p90 = scmp.eq.s32.totalorder %s10, 3
    %p91 = scmp.ne.s32.totalorder %s86, %s88
    %p92 = scmp.eq.s32.totalorder %s10, 0
    %p93 = por %p91, %p92
    %p94 = scmp.ne.s32.totalorder %s86, %s88
    %p95 = scmp.eq.s32.totalorder %s15, 3
    %p96 = por %p94, %p95
    %p97 = scmp.ne.s32.totalorder %s88, %s89
    %p98 = scmp.eq.s32.totalorder %s15, 0
    %p99 = por %p97, %p98
    %p100 = scmp.ne.s32.totalorder %s88, %s89
    %p101 = scmp.eq.s32.totalorder %s16, 3
    %p102 = por %p100, %p101
    %p104 = scmp.ne.s32.totalorder %s89, %s103
    %p105 = scmp.eq.s32.totalorder %s16, 0
    %p106 = por %p104, %p105
    %s108 = sadd.s32 %s107, 1
    %p111 = scmp.eq.s32.totalorder %s10, 3
    %p112 = scmp.ne.s32.totalorder %s107, %s109
    %p113 = scmp.eq.s32.totalorder %s10, 0
    %p114 = por %p112, %p113
    %p115 = scmp.ne.s32.totalorder %s107, %s109
    %p116 = scmp.eq.s32.totalorder %s15, 3
    %p117 = por %p115, %p116
    %p118 = scmp.ne.s32.totalorder %s109, %s110
    %p119 = scmp.eq.s32.totalorder %s15, 0
    %p120 = por %p118, %p119
    %p121 = scmp.ne.s32.totalorder %s109, %s110
    %p122 = scmp.eq.s32.totalorder %s16, 3
    %p123 = por %p121, %p122
    %p125 = scmp.ne.s32.totalorder %s110, %s124
    %p126 = scmp.eq.s32.totalorder %s16, 0
    %p127 = por %p125, %p126
    %s128 = ssub.s32 %s17, %s29
    %s129 = ssub.s32 %s18, %s25
    %s130 = sor.u32 %s128, %s129
    %p131 = scmp.eq.s32.totalorder %s130, 0
    %s133 = sadd.s32 %s132, 1
    %s134 = scalar_select %p131, %s132, %s133
    %p137 = pneg %p131
    %p138 = scmp.eq.s32.totalorder %s10, 3
    %p139 = por %p137, %p138
    %p140 = scmp.ne.s32.totalorder %s132, %s135
    %p141 = scmp.eq.s32.totalorder %s10, 0
    %p142 = por %p140, %p141
    %p143 = scmp.ne.s32.totalorder %s132, %s135
    %p144 = scmp.eq.s32.totalorder %s15, 3
    %p145 = por %p143, %p144
    %p146 = scmp.ne.s32.totalorder %s135, %s136
    %p147 = scmp.eq.s32.totalorder %s15, 0
    %p148 = por %p146, %p147
    %p149 = scmp.ne.s32.totalorder %s135, %s136
    %p150 = scmp.eq.s32.totalorder %s16, 3
    %p151 = por %p149, %p150
    %p153 = scmp.ne.s32.totalorder %s136, %s152
    %p154 = scmp.eq.s32.totalorder %s16, 0
    %p155 = por %p153, %p154
    %p156 = scmp.le.s32.totalorder 1, %s10
    %p157 = scmp.lt.s32.totalorder %s10, 5
    %p158 = pnand %p156, %p157
    %p159 = pneg %p158
    // Predicated region
    $region9: #{space_attention.1} parent=5 // pred_check
      _
    $region10: #{space_attention.1} parent=5 // pred_check_branch
      %161 = sbr.rel (%p158) target = $region12
    $region11: #{space_attention.1} parent=5 // pred_region
      %s162 = ssub.s32 %s10, 1
      // Predicated region
      $region13: #{space_attention.1} parent=11 // pred_check
        %p163 = pneg %p99
      $region14: #{space_attention.1} parent=11 // pred_check_branch
        %165 = sbr.rel (%p163) target = $region16
      $region15: #{space_attention.1} parent=11 // pred_region
        _
      $region16: #{space_attention.1} parent=11 // pred_fallthru
        _
      // Predicated region
      $region17: #{space_attention.1} parent=11 // pred_check
        %p166 = pneg %p120
      $region18: #{space_attention.1} parent=11 // pred_check_branch
        %168 = sbr.rel (%p166) target = $region20
      $region19: #{space_attention.1} parent=11 // pred_region
        _
      $region20: #{space_attention.1} parent=11 // pred_fallthru
        _
    $region12: #{space_attention.1} parent=5 // pred_fallthru
      _
    %p169 = scmp.lt.s32.totalorder %s10, 4
    // Predicated region
    $region21: #{space_attention.1} parent=5 // pred_check
      %p170 = pneg %p169
    $region22: #{space_attention.1} parent=5 // pred_check_branch
      %172 = sbr.rel (%p170) target = $region24
    $region23: #{space_attention.1} parent=5 // pred_region
      // Predicated region
      $region25: #{space_attention.1} parent=23 // pred_check
        %p173 = pneg %p44
      $region26: #{space_attention.1} parent=23 // pred_check_branch
        %175 = sbr.rel (%p173) target = $region28
      $region27: #{space_attention.1} parent=23 // pred_region
        %p176 = scmp.lt.s32.totalorder %s17, 1
        %s177 = scalar_select %p176, %s17, 1
        %p178 = scmp.lt.s32.totalorder %s18, 1
        %s179 = scalar_select %p178, %s18, 1
        %s180 = smul.addr %s177, 2
        %s181 = sadd.s32 %s179, %s180
        %s182 = smul.addr %s181, 4
        %s183 = scalar_lea.vmem %s0, %s182
      $region28: #{space_attention.1} parent=23 // pred_fallthru
        _
      // Predicated region
      $region29: #{space_attention.1} parent=23 // pred_check
        %p184 = pneg %p72
      $region30: #{space_attention.1} parent=23 // pred_check_branch
        %186 = sbr.rel (%p184) target = $region32
      $region31: #{space_attention.1} parent=23 // pred_region
        %p187 = scmp.lt.s32.totalorder %s17, 1
        %s188 = scalar_select %p187, %s17, 1
        %p189 = scmp.lt.s32.totalorder %s18, 1
        %s190 = scalar_select %p189, %s18, 1
        %s191 = smul.addr %s188, 2
        %s192 = sadd.s32 %s190, %s191
        %s193 = smul.addr %s192, 4
        %s194 = scalar_lea.vmem %s1, %s193
      $region32: #{space_attention.1} parent=23 // pred_fallthru
        _
    $region24: #{space_attention.1} parent=5 // pred_fallthru
      _
    %p195 = scmp.le.s32.totalorder 1, %s10
    %p196 = scmp.lt.s32.totalorder %s10, 5
    %p197 = pnand %p195, %p196
    %p198 = pneg %p197
    // Predicated region
    $region33: #{space_attention.1} parent=5 // pred_check
      _
    $region34: #{space_attention.1} parent=5 // pred_check_branch
      %200 = sbr.rel (%p197) target = $region36
    $region35: #{space_attention.1} parent=5 // pred_region
      %s201 = ssub.s32 %s10, 1
      %p202 = scmp.lt.s32.totalorder %s19, 1
      %s203 = scalar_select %p202, %s19, 1
      %p204 = scmp.lt.s32.totalorder %s20, 1
      %s205 = scalar_select %p204, %s20, 1
      %s206 = smul.addr %s203, 2
      %s207 = sadd.s32 %s205, %s206
      %s208 = smul.addr %s207, 4
      %s209 = scalar_lea.vmem %s0, %s208
      %p210 = pneg %p50
      %p211 = pneg %p47
      %p212 = scmp.lt.s32.totalorder %s19, 1
      %s213 = scalar_select %p212, %s19, 1
      %p214 = scmp.lt.s32.totalorder %s20, 1
      %s215 = scalar_select %p214, %s20, 1
      %s216 = smul.addr %s213, 2
      %s217 = sadd.s32 %s215, %s216
      %s218 = smul.addr %s217, 4
      %s219 = scalar_lea.vmem %s1, %s218
      %p220 = pneg %p78
      %p221 = pneg %p75
      %p222 = pneg %p99
      %p223 = pneg %p96
      %p224 = pneg %p120
      %p225 = pneg %p117
      %p226 = pneg %p148
      %p227 = pneg %p145
      %p228 = scmp.lt.s32.totalorder %s19, 1
      %s229 = scalar_select %p228, %s19, 1
      %p230 = scmp.lt.s32.totalorder %s20, 1
      %s231 = scalar_select %p230, %s20, 1
      %s232 = smul.addr %s229, 2
      %s233 = sadd.s32 %s231, %s232
      %s234 = smul.addr %s233, 4
      %s235 = scalar_lea.vmem %s4, %s234
      %p236 = scmp.lt.s32.totalorder %s19, 1
      %s237 = scalar_select %p236, %s19, 1
      %p238 = scmp.lt.s32.totalorder %s20, 1
      %s239 = scalar_select %p238, %s20, 1
      %s240 = smul.addr %s237, 2
      %s241 = sadd.s32 %s239, %s240
      %s242 = smul.addr %s241, 4
      %s243 = scalar_lea.vmem %s0, %s242
      %p244 = scmp.lt.s32.totalorder %s19, 1
      %s245 = scalar_select %p244, %s19, 1
      %p246 = scmp.lt.s32.totalorder %s20, 1
      %s247 = scalar_select %p246, %s20, 1
      %s248 = smul.addr %s245, 2
      %s249 = sadd.s32 %s247, %s248
      %s250 = smul.addr %s249, 4
      %s251 = scalar_lea.vmem %s1, %s250
      %p252 = scmp.lt.s32.totalorder %s19, 1
      %s253 = scalar_select %p252, %s19, 1
      %p254 = scmp.lt.s32.totalorder %s20, 1
      %s255 = scalar_select %p254, %s20, 1
      %s256 = smul.addr %s253, 2
      %s257 = sadd.s32 %s255, %s256
      %s258 = smul.addr %s257, 4
      %s259 = scalar_lea.vmem %s4, %s258
      %v260 = vld [vmem:[%s243] sm:$0xf]
      %v261 = vld [vmem:[%s251] sm:$0xf]
      %263 = vrot.lane.b32.xlu0 %v261, 1
      %v264 = vpop.permute.xlu0 %263
      %267 = vrot.lane.b32.xlu0 %v260, 17
      %v268 = vpop.permute.xlu0 %267
      %vm270 = vcmask 7168
      %v271 = vsel %vm270, 0.0, %v264
      %vm272 = vcmask 138240
      %v273 = vsel %vm272, %v271, %v268
      %v274 = vsel %vm272, %v268, %v264
      %vm275 = vcmask 269312
      %v276 = vsel %vm275, %v274, 0.0
      %v277 = vld [vmem:[%s2] ss:$2 sm:$0x3]
      %v279 = vperm.slane %v277, 0
      %v280 = vperm.slane %v277, 1
      %v283 = vmul.f32 %v273, %v279
      %v284 = vmul.f32 %v276, %v280
      %s285 = scalar_lea.vmem %s2, 1
      %v286 = vld [vmem:[%s285] ss:$2 sm:$0x3]
      %v288 = vperm.slane %v286, 0
      %v289 = vperm.slane %v286, 1
      %v292 = vmul.f32 %v273, %v288
      %v293 = vmul.f32 %v276, %v289
      %294 = vst [vmem:[#allocation2] sm:$0xf] %v283
      %297 = vrot.lane.b32.xlu0 %v273, 127
      %v298 = vpop.permute.xlu0 %297
      %299 = vrot.lane.b32.xlu0 %v276, 127
      %v300 = vpop.permute.xlu0 %299
      %vm301 = vcmask 1039360
      %v302 = vsel %vm301, %v298, %v300
      %304 = vst [vmem:[#allocation2 + $0x4] sm:$0xf] %v302
      %307 = vrot.lane.b32.xlu0 %v292, 126
      %v308 = vpop.permute.xlu0 %307
      %309 = vrot.lane.b32.xlu0 %v293, 126
      %v310 = vpop.permute.xlu0 %309
      %vm311 = vcmask 1031168
      %v312 = vsel %vm311, %v308, %v310
      %314 = vst [vmem:[#allocation2 + $0x8] sm:$0xf] %v312
      %317 = vrot.lane.b32.xlu0 %v283, 112
      %v318 = vpop.permute.xlu0 %317
      %319 = vrot.lane.b32.xlu0 %v284, 112
      %v320 = vpop.permute.xlu0 %319
      %vm321 = vcmask 916480
      %v322 = vsel %vm321, %v318, %v320
      %324 = vst [vmem:[#allocation2 + $0xc] sm:$0xf] %v322
      %325 = vrot.lane.b32.xlu0 %v273, 111
      %v326 = vpop.permute.xlu0 %325
      %327 = vrot.lane.b32.xlu0 %v276, 111
      %v328 = vpop.permute.xlu0 %327
      %vm329 = vcmask 908288
      %v330 = vsel %vm329, %v326, %v328
      %332 = vst [vmem:[#allocation2 + $0x10] sm:$0xf] %v330
      %333 = vrot.lane.b32.xlu0 %v292, 110
      %v334 = vpop.permute.xlu0 %333
      %335 = vrot.lane.b32.xlu0 %v293, 110
      %v336 = vpop.permute.xlu0 %335
      %vm337 = vcmask 900096
      %v338 = vsel %vm337, %v334, %v336
      %340 = vst [vmem:[#allocation2 + $0x14] sm:$0xf] %v338
      %341 = vrot.lane.b32.xlu0 %v283, 96
      %v342 = vpop.permute.xlu0 %341
      %343 = vrot.lane.b32.xlu0 %v284, 96
      %v344 = vpop.permute.xlu0 %343
      %vm345 = vcmask 785408
      %v346 = vsel %vm345, %v342, %v344
      %348 = vst [vmem:[#allocation2 + $0x18] sm:$0xf] %v346
      %349 = vrot.lane.b32.xlu0 %v273, 95
      %v350 = vpop.permute.xlu0 %349
      %351 = vrot.lane.b32.xlu0 %v276, 95
      %v352 = vpop.permute.xlu0 %351
      %vm353 = vcmask 777216
      %v354 = vsel %vm353, %v350, %v352
      %356 = vst [vmem:[#allocation2 + $0x1c] sm:$0xf] %v354
      %357 = vrot.lane.b32.xlu0 %v292, 94
      %v358 = vpop.permute.xlu0 %357
      %359 = vrot.lane.b32.xlu0 %v293, 94
      %v360 = vpop.permute.xlu0 %359
      %vm361 = vcmask 769024
      %v362 = vsel %vm361, %v358, %v360
      %364 = vst [vmem:[#allocation2 + $0x20] sm:$0xf] %v362
      %365 = vst [vmem:[#allocation2 + $0x24] sm:$0x1] 1.0
      %v366 = vld [vmem:[%s3] sm:$0x1f]
      %v367 = vld [vmem:[#allocation2] sm:$0xff]
      %v368 = vld [vmem:[#allocation2 + $0x8] sm:$0xff]
      %v369 = vld [vmem:[#allocation2 + $0x10] sm:$0xff]
      %v370 = vld [vmem:[#allocation2 + $0x18] sm:$0xff]
      %v371 = vld [vmem:[#allocation2 + $0x20] sm:$0x1f]
      %vm372 = vcmask 302080
      %v374 = vsel %vm372, %v366, 0
      %vm376 = vcmask 1044480
      %v378 = vsel %vm376, %v371, 0
      %380 = vmatpush.msra.mxu0 0.0
      %381 = vmatpush.msra.mxu0 0.0
      %382 = vmatpush.msra.mxu0 0.0
      %383 = vmatpush.msra.mxu0 0.0
      %384 = vmatpush.msra.mxu0 0.0
      %385 = vmatpush.msra.mxu0 0.0
      %386 = vmatpush.msra.mxu0 0.0
      %387 = vmatpush.msra.mxu0 0.0
      %388 = vmatpush.msra.mxu0 0.0
      %389 = vmatpush.msra.mxu0 0.0
      %390 = vmatpush.msra.mxu0 0.0
      %391 = vmatpush.msra.mxu0 %v378
      %392 = vmatpush.msra.mxu0 %v370
      %393 = vmatpush.msra.mxu0 %v369
      %394 = vmatpush.msra.mxu0 %v368
      %395 = vmatpush.msra.mxu0 %v367
      %396 = vmatmul.f32.gmra.mxu0 %v374
      %v397 = vpop.f32.mrf.mxu0
      %v398 = vadd.f32 0.0, %v397
      %399 = vdwg.mxu0
      %v400 = vxor.u32 %v398, 2147483648
      %v401 = vmul.f32 %v400, 1.442695
      %v402 = vpow.pop %v401
      %v403 = vadd.f32 %v402, 1.0
      %v404 = vrcp.pop %v403
      %v405 = vmul.f32 %v403, %v404
      %v406 = vsub.f32 1.0, %v405
      %v407 = vmul.f32 %v404, %v406
      %v408 = vadd.f32 %v404, %v407
      %vm409 = vweird.f32 %v403
      %vm410 = vweird.f32 %v404
      %vm411 = vmor %vm409, %vm410
      %v412 = vsel %vm411, %v404, %v408
      %v413 = vand.u32 2147483647, %v403
      %vm414 = vcmp.eq.f32.partialorder %v413, 8.507059e+37
      %v415 = vand.u32 %v403, 2147483648
      %v416 = vor.u32 1.1754944e-38, %v415
      %v417 = vsel %vm414, %v416, %v412
      %v418 = vmul.f32 1.0, %v417
      %v419 = vperm.slane %v418, 4
      %v420 = vmul.f32 %v398, %v419
      %v421 = vadd.f32 %v420, %v260
      %422 = vst [vmem:[%s259] sm:$0xf] %v421
      %p423 = scmp.lt.s32.totalorder %s19, 1
      %s424 = scalar_select %p423, %s19, 1
      %p425 = scmp.lt.s32.totalorder %s20, 1
      %s426 = scalar_select %p425, %s20, 1
      %s427 = smul.addr %s424, 2
      %s428 = sadd.s32 %s426, %s427
      %s429 = smul.addr %s428, 4
      %s430 = scalar_lea.vmem %s4, %s429
      // Predicated region
      $region37: #{space_attention.1} parent=35 // pred_check
        %p431 = pneg %p145
      $region38: #{space_attention.1} parent=35 // pred_check_branch
        %433 = sbr.rel (%p431) target = $region40
      $region39: #{space_attention.1} parent=35 // pred_region
        _
      $region40: #{space_attention.1} parent=35 // pred_fallthru
        _
    $region36: #{space_attention.1} parent=5 // pred_fallthru
      _
    %p434 = scmp.le.s32.totalorder 2, %s10
    // Predicated region
    $region41: #{space_attention.1} parent=5 // pred_check
      %p435 = pneg %p434
    $region42: #{space_attention.1} parent=5 // pred_check_branch
      %437 = sbr.rel (%p435) target = $region44
    $region43: #{space_attention.1} parent=5 // pred_region
      %s438 = ssub.s32 %s10, 2
      // Predicated region
      $region45: #{space_attention.1} parent=43 // pred_check
        %p439 = pneg %p151
      $region46: #{space_attention.1} parent=43 // pred_check_branch
        %441 = sbr.rel (%p439) target = $region48
      $region47: #{space_attention.1} parent=43 // pred_region
        %p442 = scmp.lt.s32.totalorder %s21, 1
        %s443 = scalar_select %p442, %s21, 1
        %p444 = scmp.lt.s32.totalorder %s22, 1
        %s445 = scalar_select %p444, %s22, 1
        %s446 = smul.addr %s443, 2
        %s447 = sadd.s32 %s445, %s446
        %s448 = smul.addr %s447, 4
        %s449 = scalar_lea.vmem %s4, %s448
      $region48: #{space_attention.1} parent=43 // pred_fallthru
        _
    $region44: #{space_attention.1} parent=5 // pred_fallthru
      _
  $region6: #{space_attention.1} parent=0 // loop_footer
    %s14 = sadd.s32 1, %s10
  $region7: #{space_attention.1} parent=0 // loop_footer_branch
    %9 = sbr.rel target = $region3
  $region8: #{space_attention.1} parent=0 // loop_exit
    _

</llo_original>
